<compile_context>
chip_gen: v5e
topology: v5e:2x2
jax: 0.10.0
libtpu: 0.0.40
codegen_flags: <defaults>
</compile_context>

<pallas_src>
import jax
import jax.numpy as jnp
from jax.experimental import pallas as pl
from jax.experimental.pallas import tpu as pltpu

REG_STRENGTH = 1.0            # r
INV_R = 1.0 / REG_STRENGTH    # compatibility = exp(violation / r - 1)
HID_PAD = 128                 # pad hidden width to a full 128-lane vreg


def _round_up(x, m):
    return (x + m - 1) // m * m


def compatibility_kernel(x_ref, y_ref, w1x_ref, w1y_ref, b1_ref, w2_ref, b2_ref,
                         out_ref):
    x = x_ref[...]                      # (TB, D) bf16
    y = y_ref[...]                      # (TB, D) bf16
    d = x.shape[-1]

    # --- first layers: bf16 MXU matmuls, f32 accumulation ---
    hx = jnp.dot(x, w1x_ref[...], preferred_element_type=jnp.float32) + b1_ref[0:1, :]
    hx = jnp.maximum(hx, 0.0)
    hy = jnp.dot(y, w1y_ref[...], preferred_element_type=jnp.float32) + b1_ref[1:2, :]
    hy = jnp.maximum(hy, 0.0)

    # --- fused second layers (N=1): VPU multiply + one lane reduce ---
    # f(x) + g(y) per row; keeps the MXU free of 1-column drains.
    fg = jnp.sum(hx * w2_ref[0:1, :] + hy * w2_ref[1:2, :], axis=-1, keepdims=True)
    fg = fg + b2_ref[...]               # b2x + b2y pre-summed on host

    # --- transport_cost(x, y): per-pair mean squared distance (f32) ---
    diff = x.astype(jnp.float32) - y.astype(jnp.float32)
    cost = jnp.sum(diff * diff, axis=-1, keepdims=True) * (1.0 / d)

    # --- violation and entropy-regularized compatibility ---
    viol = fg - cost
    out_ref[...] = jnp.exp(viol * INV_R - 1.0)


def _vmem_footprint(tb, d):
    """Conservative VMEM bytes: everything counted as double-buffered."""
    return (2 * 2 * tb * d * 2            # x, y blocks (bf16, 2 buffers each)
            + 2 * 2 * d * HID_PAD * 2     # w1x, w1y resident (bf16), counted x2
            + 2 * 2 * (2 * HID_PAD) * 4   # b1, w2 (2, HID_PAD) f32
            + 2 * 4                       # b2 scalar
            + 2 * tb * 4)                 # output block (f32)


def compatibility_forward(x_img, y_img, params):
    """x_img, y_img: (B, C, H, W). Returns (B,) compatibility values (f32)."""
    B = x_img.shape[0]
    D = x_img.shape[1] * x_img.shape[2] * x_img.shape[3]

    # Batch tile: as large as comfortably fits double-buffered in VMEM,
    # multiple of 8 (sublane), capped at 512 rows.
    TB = min(512, _round_up(B, 8))
    while TB > 8 and _vmem_footprint(TB, D) > (40 << 20):
        TB //= 2
    TB = max(8, _round_up(TB, 8))
    B_pad = _round_up(B, TB)
    grid = (B_pad // TB,)

    # Inputs: flatten, cast to bf16, pad batch to a whole number of tiles.
    x_flat = x_img.reshape(B, D).astype(jnp.bfloat16)
    y_flat = y_img.reshape(B, D).astype(jnp.bfloat16)
    if B_pad != B:
        pad = ((0, B_pad - B), (0, 0))
        x_flat = jnp.pad(x_flat, pad)
        y_flat = jnp.pad(y_flat, pad)

    # Weights: zero-pad hidden dim to HID_PAD (exact: extra columns contribute 0).
    def pad_h(a):
        return jnp.pad(a, ((0, 0), (0, HID_PAD - a.shape[1])))

    w1x = pad_h(params["w1x"]).astype(jnp.bfloat16)                 # (D, 128)
    w1y = pad_h(params["w1y"]).astype(jnp.bfloat16)                 # (D, 128)
    b1 = jnp.concatenate([pad_h(params["b1x"]),
                          pad_h(params["b1y"])], axis=0).astype(jnp.float32)   # (2, 128)
    w2 = jnp.concatenate([pad_h(params["w2x"].T),
                          pad_h(params["w2y"].T)], axis=0).astype(jnp.float32)  # (2, 128)
    b2 = (params["b2x"] + params["b2y"]).astype(jnp.float32)        # (1, 1)

    xy_spec = pl.BlockSpec((TB, D), lambda i: (i, 0))

    def const_spec(shape):
        return pl.BlockSpec(shape, lambda i: (0, 0))   # resident across grid steps

    vmem_need = _vmem_footprint(TB, D)
    vmem_limit = min(64 << 20, max(int(vmem_need * 1.5), 16 << 20))

    cost_est = pl.CostEstimate(
        flops=int(4 * B_pad * D * HID_PAD + 5 * B_pad * D),
        transcendentals=int(B_pad),
        bytes_accessed=int(2 * B_pad * D * 2 + 2 * D * HID_PAD * 2 + B_pad * 4))

    out = pl.pallas_call(
        compatibility_kernel,
        out_shape=jax.ShapeDtypeStruct((B_pad, 1), jnp.float32),
        grid=grid,
        in_specs=[xy_spec, xy_spec,
                  const_spec((D, HID_PAD)),    # w1x
                  const_spec((D, HID_PAD)),    # w1y
                  const_spec((2, HID_PAD)),    # b1 (rows: x, y)
                  const_spec((2, HID_PAD)),    # w2 (rows: x, y)
                  const_spec((1, 1))],         # b2x + b2y
        out_specs=pl.BlockSpec((TB, 1), lambda i: (i, 0)),
        compiler_params=pltpu.CompilerParams(
            dimension_semantics=("parallel",),
            vmem_limit_bytes=vmem_limit),
        cost_estimate=cost_est,
    )(x_flat, y_flat, w1x, w1y, b1, w2, b2)

    return out[:B, 0]


def init_params(key, D, hid):
    ks = jax.random.split(key, 4)
    s1, s2 = 0.02, 0.1
    return {
        "w1x": s1 * jax.random.normal(ks[0], (D, hid), jnp.float32),
        "b1x": jnp.zeros((1, hid), jnp.float32),
        "w2x": s2 * jax.random.normal(ks[1], (hid, 1), jnp.float32),
        "b2x": jnp.zeros((1, 1), jnp.float32),
        "w1y": s1 * jax.random.normal(ks[2], (D, hid), jnp.float32),
        "b1y": jnp.zeros((1, hid), jnp.float32),
        "w2y": s2 * jax.random.normal(ks[3], (hid, 1), jnp.float32),
        "b2y": jnp.zeros((1, 1), jnp.float32),
    }


if __name__ == "__main__":
    B, C, H, W = 2, 4, 16, 16
    HID = 32
    D = C * H * W

    key = jax.random.PRNGKey(0)
    kx, ky, kp = jax.random.split(key, 3)
    x = jax.random.normal(kx, (B, C, H, W), jnp.float32)
    y = jax.random.normal(ky, (B, C, H, W), jnp.float32)
    params = init_params(kp, D, HID)

    out = compatibility_forward(x, y, params)
    jax.block_until_ready(out)

    # Reference in plain JAX with the same bf16 input/weight casts + f32 math.
    xb = x.reshape(B, D).astype(jnp.bfloat16)
    yb = y.reshape(B, D).astype(jnp.bfloat16)
    hx = jnp.maximum(jnp.dot(xb, params["w1x"].astype(jnp.bfloat16),
                             preferred_element_type=jnp.float32) + params["b1x"], 0.0)
    hy = jnp.maximum(jnp.dot(yb, params["w1y"].astype(jnp.bfloat16),
                             preferred_element_type=jnp.float32) + params["b1y"], 0.0)
    fx = jnp.sum(hx * params["w2x"].T, axis=-1, keepdims=True) + params["b2x"]
    gy = jnp.sum(hy * params["w2y"].T, axis=-1, keepdims=True) + params["b2y"]
    diff = xb.astype(jnp.float32) - yb.astype(jnp.float32)
    cst = jnp.mean(diff * diff, axis=-1, keepdims=True)
    ref = jnp.exp((fx + gy - cst) * INV_R - 1.0)[:, 0]

    assert jnp.allclose(out, ref, rtol=5e-3, atol=5e-3), (out, ref)
    print("KERNEL_OK")
</pallas_src>

<mosaic_0001>
module attributes {stable_mosaic.version = 11 : i64} {
  func.func @compatibility_kernel(%arg0: i32, %arg1: memref<8x1024xbf16, #tpu.memory_space<vmem>>, %arg2: memref<8x1024xbf16, #tpu.memory_space<vmem>>, %arg3: memref<1024x128xbf16, #tpu.memory_space<vmem>>, %arg4: memref<1024x128xbf16, #tpu.memory_space<vmem>>, %arg5: memref<2x128xf32, #tpu.memory_space<vmem>>, %arg6: memref<2x128xf32, #tpu.memory_space<vmem>>, %arg7: memref<1x1xf32, #tpu.memory_space<vmem>>, %arg8: memref<8x1xf32, #tpu.memory_space<vmem>>) attributes {dimension_semantics = [#tpu.dimension_semantics<parallel>], iteration_bounds = array<i64: 1>, scalar_prefetch = 0 : i64, scratch_operands = 0 : i64, tpu.core_type = #tpu.core_type<tc>, window_params = [{transform_indices = @transform_0, window_bounds = array<i64: 8, 1024>}, {transform_indices = @transform_1, window_bounds = array<i64: 8, 1024>}, {pipeline_mode = #tpu.pipeline_mode<synchronous>, transform_indices = @transform_2, window_bounds = array<i64: 1024, 128>}, {pipeline_mode = #tpu.pipeline_mode<synchronous>, transform_indices = @transform_3, window_bounds = array<i64: 1024, 128>}, {pipeline_mode = #tpu.pipeline_mode<synchronous>, transform_indices = @transform_4, window_bounds = array<i64: 2, 128>}, {pipeline_mode = #tpu.pipeline_mode<synchronous>, transform_indices = @transform_5, window_bounds = array<i64: 2, 128>}, {pipeline_mode = #tpu.pipeline_mode<synchronous>, transform_indices = @transform_6, window_bounds = array<i64: 1, 1>}, {transform_indices = @transform_7, window_bounds = array<i64: 8, 1>}]} {
    %c0 = arith.constant 0 : index
    %c0_0 = arith.constant 0 : index
    %0 = vector.load %arg1[%c0, %c0_0] : memref<8x1024xbf16, #tpu.memory_space<vmem>>, vector<8x1024xbf16>
    %c0_1 = arith.constant 0 : index
    %c0_2 = arith.constant 0 : index
    %1 = vector.load %arg2[%c0_1, %c0_2] : memref<8x1024xbf16, #tpu.memory_space<vmem>>, vector<8x1024xbf16>
    %c0_3 = arith.constant 0 : index
    %c0_4 = arith.constant 0 : index
    %2 = vector.load %arg3[%c0_3, %c0_4] : memref<1024x128xbf16, #tpu.memory_space<vmem>>, vector<1024x128xbf16>
    %cst = arith.constant dense<0.000000e+00> : vector<8x128xf32>
    %3 = tpu.matmul %0, %2, %cst {dimension_numbers = #tpu.dot_dimension_numbers<[1], [0], [0], [1], [0, 0, 1, 1], [], []>} : vector<8x1024xbf16>, vector<1024x128xbf16>, vector<8x128xf32> -> vector<8x128xf32>
    %c0_5 = arith.constant 0 : index
    %c0_6 = arith.constant 0 : index
    %4 = vector.load %arg5[%c0_5, %c0_6] : memref<2x128xf32, #tpu.memory_space<vmem>>, vector<1x128xf32>
    %5 = vector.broadcast %4 : vector<1x128xf32> to vector<8x128xf32>
    %6 = arith.addf %3, %5 : vector<8x128xf32>
    %cst_7 = arith.constant 0.000000e+00 : f32
    %7 = vector.broadcast %cst_7 : f32 to vector<8x128xf32>
    %8 = arith.maximumf %6, %7 : vector<8x128xf32>
    %c0_8 = arith.constant 0 : index
    %c0_9 = arith.constant 0 : index
    %9 = vector.load %arg4[%c0_8, %c0_9] : memref<1024x128xbf16, #tpu.memory_space<vmem>>, vector<1024x128xbf16>
    %cst_10 = arith.constant dense<0.000000e+00> : vector<8x128xf32>
    %10 = tpu.matmul %1, %9, %cst_10 {dimension_numbers = #tpu.dot_dimension_numbers<[1], [0], [0], [1], [0, 0, 1, 1], [], []>} : vector<8x1024xbf16>, vector<1024x128xbf16>, vector<8x128xf32> -> vector<8x128xf32>
    %c1 = arith.constant 1 : index
    %c0_11 = arith.constant 0 : index
    %11 = vector.load %arg5[%c1, %c0_11] : memref<2x128xf32, #tpu.memory_space<vmem>>, vector<1x128xf32>
    %12 = vector.broadcast %11 : vector<1x128xf32> to vector<8x128xf32>
    %13 = arith.addf %10, %12 : vector<8x128xf32>
    %cst_12 = arith.constant 0.000000e+00 : f32
    %14 = vector.broadcast %cst_12 : f32 to vector<8x128xf32>
    %15 = arith.maximumf %13, %14 : vector<8x128xf32>
    %c0_13 = arith.constant 0 : index
    %c0_14 = arith.constant 0 : index
    %16 = vector.load %arg6[%c0_13, %c0_14] : memref<2x128xf32, #tpu.memory_space<vmem>>, vector<1x128xf32>
    %17 = vector.broadcast %16 : vector<1x128xf32> to vector<8x128xf32>
    %18 = arith.mulf %8, %17 : vector<8x128xf32>
    %c1_15 = arith.constant 1 : index
    %c0_16 = arith.constant 0 : index
    %19 = vector.load %arg6[%c1_15, %c0_16] : memref<2x128xf32, #tpu.memory_space<vmem>>, vector<1x128xf32>
    %20 = vector.broadcast %19 : vector<1x128xf32> to vector<8x128xf32>
    %21 = arith.mulf %15, %20 : vector<8x128xf32>
    %22 = arith.addf %18, %21 : vector<8x128xf32>
    %cst_17 = arith.constant dense<0.000000e+00> : vector<8xf32>
    %23 = vector.multi_reduction <add>, %22, %cst_17 [1] : vector<8x128xf32> to vector<8xf32>
    %24 = vector.shape_cast %23 : vector<8xf32> to vector<8x1xf32>
    %c0_18 = arith.constant 0 : index
    %c0_19 = arith.constant 0 : index
    %25 = vector.load %arg7[%c0_18, %c0_19] : memref<1x1xf32, #tpu.memory_space<vmem>>, vector<1x1xf32>
    %26 = vector.broadcast %25 : vector<1x1xf32> to vector<8x1xf32>
    %27 = arith.addf %24, %26 : vector<8x1xf32>
    %28 = arith.extf %0 : vector<8x1024xbf16> to vector<8x1024xf32>
    %29 = arith.extf %1 : vector<8x1024xbf16> to vector<8x1024xf32>
    %30 = arith.subf %28, %29 : vector<8x1024xf32>
    %31 = arith.mulf %30, %30 : vector<8x1024xf32>
    %cst_20 = arith.constant dense<0.000000e+00> : vector<8xf32>
    %32 = vector.multi_reduction <add>, %31, %cst_20 [1] : vector<8x1024xf32> to vector<8xf32>
    %33 = vector.shape_cast %32 : vector<8xf32> to vector<8x1xf32>
    %cst_21 = arith.constant 9.765625E-4 : f32
    %34 = vector.broadcast %cst_21 : f32 to vector<8x1xf32>
    %35 = arith.mulf %33, %34 : vector<8x1xf32>
    %36 = arith.subf %27, %35 : vector<8x1xf32>
    %cst_22 = arith.constant 1.000000e+00 : f32
    %37 = vector.broadcast %cst_22 : f32 to vector<8x1xf32>
    %38 = arith.mulf %36, %37 : vector<8x1xf32>
    %cst_23 = arith.constant 1.000000e+00 : f32
    %39 = vector.broadcast %cst_23 : f32 to vector<8x1xf32>
    %40 = arith.subf %38, %39 : vector<8x1xf32>
    %41 = math.exp %40 : vector<8x1xf32>
    %c0_24 = arith.constant 0 : index
    %c0_25 = arith.constant 0 : index
    %42 = vector.load %arg8[%c0_24, %c0_25] : memref<8x1xf32, #tpu.memory_space<vmem>>, vector<8x1xf32>
    tpu.vector_store %arg8[%c0_24, %c0_25], %41 {strides = array<i32>} : memref<8x1xf32, #tpu.memory_space<vmem>>, vector<8x1xf32>,
    return
  }
  func.func @transform_0(%arg0: i32) -> (i32, i32) {
    %c0_i32 = arith.constant 0 : i32
    %c0_i32_0 = arith.constant 0 : i32
    return %arg0, %c0_i32 : i32, i32
  }
  func.func @transform_1(%arg0: i32) -> (i32, i32) {
    %c0_i32 = arith.constant 0 : i32
    %c0_i32_0 = arith.constant 0 : i32
    return %arg0, %c0_i32 : i32, i32
  }
  func.func @transform_2(%arg0: i32) -> (i32, i32) {
    %c0_i32 = arith.constant 0 : i32
    %c0_i32_0 = arith.constant 0 : i32
    %c0_i32_1 = arith.constant 0 : i32
    return %c0_i32, %c0_i32_0 : i32, i32
  }
  func.func @transform_3(%arg0: i32) -> (i32, i32) {
    %c0_i32 = arith.constant 0 : i32
    %c0_i32_0 = arith.constant 0 : i32
    %c0_i32_1 = arith.constant 0 : i32
    return %c0_i32, %c0_i32_0 : i32, i32
  }
  func.func @transform_4(%arg0: i32) -> (i32, i32) {
    %c0_i32 = arith.constant 0 : i32
    %c0_i32_0 = arith.constant 0 : i32
    %c0_i32_1 = arith.constant 0 : i32
    return %c0_i32, %c0_i32_0 : i32, i32
  }
  func.func @transform_5(%arg0: i32) -> (i32, i32) {
    %c0_i32 = arith.constant 0 : i32
    %c0_i32_0 = arith.constant 0 : i32
    %c0_i32_1 = arith.constant 0 : i32
    return %c0_i32, %c0_i32_0 : i32, i32
  }
  func.func @transform_6(%arg0: i32) -> (i32, i32) {
    %c0_i32 = arith.constant 0 : i32
    %c0_i32_0 = arith.constant 0 : i32
    %c0_i32_1 = arith.constant 0 : i32
    return %c0_i32, %c0_i32_0 : i32, i32
  }
  func.func @transform_7(%arg0: i32) -> (i32, i32) {
    %c0_i32 = arith.constant 0 : i32
    %c0_i32_0 = arith.constant 0 : i32
    return %arg0, %c0_i32 : i32, i32
  }
}

</mosaic_0001>

<llo_original>
// kernel: tpu_custom_call.1
$region0: #{tpu_custom_call.1}
  #allocation0 [shape = 'u32[]', space=smem, size = 0x4, offset = 0x4, fixed_abs, tag = 'smem constant byte address 0x4 - core index']
  #allocation1 [shape = 'u32[72,128]{1,0:T(1,128)}', space=vmem, size = 0x9000, scoped, tag = 'internal scratch']
  #allocation2 [shape = 'f32[1,1]{1,0:T(1,128)S(1)}', space=vmem, size = 0x200, scoped, tag = 'scoped memory for tpu_custom_call.1']
  %s0 = inlined_call_operand.hbm [shape: bf16[8,1024], index: 0, kind: input, shape index: {}]
  %s1 = inlined_call_operand.hbm [shape: bf16[8,1024], index: 1, kind: input, shape index: {}]
  %s2 = inlined_call_operand.hbm [shape: bf16[1024,128], index: 2, kind: input, shape index: {}]
  %s3 = inlined_call_operand.hbm [shape: bf16[1024,128], index: 3, kind: input, shape index: {}]
  %s4 = inlined_call_operand.vmem [shape: f32[2,128], index: 4, kind: input, shape index: {}]
  %s5 = inlined_call_operand.vmem [shape: f32[2,128], index: 5, kind: input, shape index: {}]
  %s6 = inlined_call_operand.<no memory space> [shape: f32[1,1], index: 6, kind: input, shape index: {}]
  %s7 = inlined_call_operand.vmem [shape: f32[8,1], index: 7, kind: output, shape index: {}]
  %s8 = sld [smem:[#allocation0]]
  $region54: #{tpu_custom_call.1} parent=0
    _
  %s10 = ssub.s32 1, %s8
  %s11 = scalar_select 0, %s10, %s8
  %v12 = vstv %s6
  %13 = vst [vmem:[#allocation2] sm:$0x1] %v12
  $region1: #{tpu_custom_call.1} parent=0
    #allocation3 [shape = 'u8[16384]{0}', space=vmem, size = 0x4000, scoped, tag = 'input window, operand 0, single buffered']
    #allocation4 [shape = 's32[1]{0}', space=sflag, size = 0x4, scoped, tag = 'scoped memory for tpu_custom_call.1']
    #allocation5 [shape = 'u8[16384]{0}', space=vmem, size = 0x4000, scoped, tag = 'input window, operand 1, single buffered']
    #allocation6 [shape = 's32[1]{0}', space=sflag, size = 0x4, scoped, tag = 'scoped memory for tpu_custom_call.1']
    #allocation7 [shape = 'u8[262144]{0}', space=vmem, size = 0x40000, scoped, tag = 'input window, operand 2, single buffered']
    #allocation8 [shape = 'u8[262144]{0}', space=vmem, size = 0x40000, scoped, tag = 'input window, operand 3, single buffered']
    #allocation9 [shape = 's32[1]{0}', space=sflag, size = 0x4, scoped, tag = 'scoped memory for tpu_custom_call.1']
    %14 = vsyncpa [#allocation4], 0
    %15 = vsyncpa [#allocation6], 0
    %16 = vsyncpa [#allocation9], 0
    // Predicated region
    $region2: #{tpu_custom_call.1} parent=1 // pred_check
      _
    $region3: #{tpu_custom_call.1} parent=1 // pred_check_branch
      %18 = sbr.rel (0) target = $region5
    $region4: #{tpu_custom_call.1} parent=1 // pred_region
      %20 = vsyncadd [#allocation4], 0
      %s22 = sshll.u32 %s0, 4
      %s23 = int_to_ptr.hbm [resolvable:$true] %s22
      %s24 = sshll.u32 [#allocation3], 4
      %s25 = int_to_ptr.vmem [resolvable:$true] %s24
      %27 = dma.hbm_to_vmem [thread:$0]  %s23, 512, %s25, [#allocation4]
    $region5: #{tpu_custom_call.1} parent=1 // pred_fallthru
      _
    // Predicated region
    $region6: #{tpu_custom_call.1} parent=1 // pred_check
      _
    $region7: #{tpu_custom_call.1} parent=1 // pred_check_branch
      %29 = sbr.rel (0) target = $region9
    $region8: #{tpu_custom_call.1} parent=1 // pred_region
      %31 = vsyncadd [#allocation6], 0
      %s33 = sshll.u32 %s1, 4
      %s34 = int_to_ptr.hbm [resolvable:$true] %s33
      %s35 = sshll.u32 [#allocation5], 4
      %s36 = int_to_ptr.vmem [resolvable:$true] %s35
      %38 = dma.hbm_to_vmem [thread:$0]  %s34, 512, %s36, [#allocation6]
    $region9: #{tpu_custom_call.1} parent=1 // pred_fallthru
      _
    // Predicated region
    $region10: #{tpu_custom_call.1} parent=1 // pred_check
      _
    $region11: #{tpu_custom_call.1} parent=1 // pred_check_branch
      %40 = sbr.rel (0) target = $region13
    $region12: #{tpu_custom_call.1} parent=1 // pred_region
      %42 = vsyncadd [#allocation6], 0
      %s43 = sshll.u32 %s2, 4
      %s44 = int_to_ptr.hbm [resolvable:$true] %s43
      %s45 = sshll.u32 [#allocation7], 4
      %s46 = int_to_ptr.vmem [resolvable:$true] %s45
      %51 = dma.hbm_to_vmem [thread:$0]  %s44, 8192, %s46, [#allocation6], 64, 64, 4
    $region13: #{tpu_custom_call.1} parent=1 // pred_fallthru
      _
    // Predicated region
    $region14: #{tpu_custom_call.1} parent=1 // pred_check
      _
    $region15: #{tpu_custom_call.1} parent=1 // pred_check_branch
      %53 = sbr.rel (0) target = $region17
    $region16: #{tpu_custom_call.1} parent=1 // pred_region
      %55 = vsyncadd [#allocation9], 0
      %s56 = sshll.u32 %s3, 4
      %s57 = int_to_ptr.hbm [resolvable:$true] %s56
      %s58 = sshll.u32 [#allocation8], 4
      %s59 = int_to_ptr.vmem [resolvable:$true] %s58
      %64 = dma.hbm_to_vmem [thread:$0]  %s57, 8192, %s59, [#allocation9], 64, 64, 4
    $region17: #{tpu_custom_call.1} parent=1 // pred_fallthru
      _
    // Predicated region
    $region18: #{tpu_custom_call.1} parent=1 // pred_check
      _
    $region19: #{tpu_custom_call.1} parent=1 // pred_check_branch
      %66 = sbr.rel (0) target = $region21
    $region20: #{tpu_custom_call.1} parent=1 // pred_region
      _
    $region21: #{tpu_custom_call.1} parent=1 // pred_fallthru
      _
    // Predicated region
    $region22: #{tpu_custom_call.1} parent=1 // pred_check
      _
    $region23: #{tpu_custom_call.1} parent=1 // pred_check_branch
      %68 = sbr.rel (0) target = $region25
    $region24: #{tpu_custom_call.1} parent=1 // pred_region
      _
    $region25: #{tpu_custom_call.1} parent=1 // pred_fallthru
      _
    // Predicated region
    $region26: #{tpu_custom_call.1} parent=1 // pred_check
      _
    $region27: #{tpu_custom_call.1} parent=1 // pred_check_branch
      %70 = sbr.rel (0) target = $region29
    $region28: #{tpu_custom_call.1} parent=1 // pred_region
      _
    $region29: #{tpu_custom_call.1} parent=1 // pred_fallthru
      _
    // Predicated region
    $region30: #{tpu_custom_call.1} parent=1 // pred_check
      _
    $region31: #{tpu_custom_call.1} parent=1 // pred_check_branch
      %72 = sbr.rel (0) target = $region33
    $region32: #{tpu_custom_call.1} parent=1 // pred_region
      %74 = dma.done [#allocation4], 512
    $region33: #{tpu_custom_call.1} parent=1 // pred_fallthru
      _
    // Predicated region
    $region34: #{tpu_custom_call.1} parent=1 // pred_check
      _
    $region35: #{tpu_custom_call.1} parent=1 // pred_check_branch
      %76 = sbr.rel (0) target = $region37
    $region36: #{tpu_custom_call.1} parent=1 // pred_region
      %78 = dma.done [#allocation6], 512
    $region37: #{tpu_custom_call.1} parent=1 // pred_fallthru
      _
    // Predicated region
    $region38: #{tpu_custom_call.1} parent=1 // pred_check
      _
    $region39: #{tpu_custom_call.1} parent=1 // pred_check_branch
      %80 = sbr.rel (0) target = $region41
    $region40: #{tpu_custom_call.1} parent=1 // pred_region
      %82 = dma.done [#allocation6], 8192
    $region41: #{tpu_custom_call.1} parent=1 // pred_fallthru
      _
    // Predicated region
    $region42: #{tpu_custom_call.1} parent=1 // pred_check
      _
    $region43: #{tpu_custom_call.1} parent=1 // pred_check_branch
      %84 = sbr.rel (0) target = $region45
    $region44: #{tpu_custom_call.1} parent=1 // pred_region
      %86 = dma.done [#allocation9], 8192
    $region45: #{tpu_custom_call.1} parent=1 // pred_fallthru
      _
    %v87 = vld [vmem:[#allocation3] sm:$0xff]
    %v88 = vld [vmem:[#allocation3 + $0x8] sm:$0xff]
    %v89 = vld [vmem:[#allocation3 + $0x10] sm:$0xff]
    %v90 = vld [vmem:[#allocation3 + $0x18] sm:$0xff]
    %v91 = vld [vmem:[#allocation5] sm:$0xff]
    %v92 = vld [vmem:[#allocation5 + $0x8] sm:$0xff]
    %v93 = vld [vmem:[#allocation5 + $0x10] sm:$0xff]
    %v94 = vld [vmem:[#allocation5 + $0x18] sm:$0xff]
    %v95 = vld [vmem:[#allocation7] sm:$0xf]
    %v96 = vld [vmem:[#allocation7 + $0x4] sm:$0xf]
    %v97 = vld [vmem:[#allocation7 + $0x8] sm:$0xf]
    %v98 = vld [vmem:[#allocation7 + $0xc] sm:$0xf]
    %v99 = vld [vmem:[#allocation7 + $0x10] sm:$0xf]
    %v100 = vld [vmem:[#allocation7 + $0x14] sm:$0xf]
    %v101 = vld [vmem:[#allocation7 + $0x18] sm:$0xf]
    %v102 = vld [vmem:[#allocation7 + $0x1c] sm:$0xf]
    %v103 = vld [vmem:[#allocation7 + $0x20] sm:$0xf]
    %v104 = vld [vmem:[#allocation7 + $0x24] sm:$0xf]
    %v105 = vld [vmem:[#allocation7 + $0x28] sm:$0xf]
    %v106 = vld [vmem:[#allocation7 + $0x2c] sm:$0xf]
    %v107 = vld [vmem:[#allocation7 + $0x30] sm:$0xf]
    %v108 = vld [vmem:[#allocation7 + $0x34] sm:$0xf]
    %v109 = vld [vmem:[#allocation7 + $0x38] sm:$0xf]
    %v110 = vld [vmem:[#allocation7 + $0x3c] sm:$0xf]
    %v111 = vld [vmem:[#allocation7 + $0x40] sm:$0xf]
    %v112 = vld [vmem:[#allocation7 + $0x44] sm:$0xf]
    %v113 = vld [vmem:[#allocation7 + $0x48] sm:$0xf]
    %v114 = vld [vmem:[#allocation7 + $0x4c] sm:$0xf]
    %v115 = vld [vmem:[#allocation7 + $0x50] sm:$0xf]
    %v116 = vld [vmem:[#allocation7 + $0x54] sm:$0xf]
    %v117 = vld [vmem:[#allocation7 + $0x58] sm:$0xf]
    %v118 = vld [vmem:[#allocation7 + $0x5c] sm:$0xf]
    %v119 = vld [vmem:[#allocation7 + $0x60] sm:$0xf]
    %v120 = vld [vmem:[#allocation7 + $0x64] sm:$0xf]
    %v121 = vld [vmem:[#allocation7 + $0x68] sm:$0xf]
    %v122 = vld [vmem:[#allocation7 + $0x6c] sm:$0xf]
    %v123 = vld [vmem:[#allocation7 + $0x70] sm:$0xf]
    %v124 = vld [vmem:[#allocation7 + $0x74] sm:$0xf]
    %v125 = vld [vmem:[#allocation7 + $0x78] sm:$0xf]
    %v126 = vld [vmem:[#allocation7 + $0x7c] sm:$0xf]
    %v127 = vld [vmem:[#allocation7 + $0x80] sm:$0xf]
    %v128 = vld [vmem:[#allocation7 + $0x84] sm:$0xf]
    %v129 = vld [vmem:[#allocation7 + $0x88] sm:$0xf]
    %v130 = vld [vmem:[#allocation7 + $0x8c] sm:$0xf]
    %v131 = vld [vmem:[#allocation7 + $0x90] sm:$0xf]
    %v132 = vld [vmem:[#allocation7 + $0x94] sm:$0xf]
    %v133 = vld [vmem:[#allocation7 + $0x98] sm:$0xf]
    %v134 = vld [vmem:[#allocation7 + $0x9c] sm:$0xf]
    %v135 = vld [vmem:[#allocation7 + $0xa0] sm:$0xf]
    %v136 = vld [vmem:[#allocation7 + $0xa4] sm:$0xf]
    %v137 = vld [vmem:[#allocation7 + $0xa8] sm:$0xf]
    %v138 = vld [vmem:[#allocation7 + $0xac] sm:$0xf]
    %v139 = vld [vmem:[#allocation7 + $0xb0] sm:$0xf]
    %v140 = vld [vmem:[#allocation7 + $0xb4] sm:$0xf]
    %v141 = vld [vmem:[#allocation7 + $0xb8] sm:$0xf]
    %v142 = vld [vmem:[#allocation7 + $0xbc] sm:$0xf]
    %v143 = vld [vmem:[#allocation7 + $0xc0] sm:$0xf]
    %v144 = vld [vmem:[#allocation7 + $0xc4] sm:$0xf]
    %v145 = vld [vmem:[#allocation7 + $0xc8] sm:$0xf]
    %v146 = vld [vmem:[#allocation7 + $0xcc] sm:$0xf]
    %v147 = vld [vmem:[#allocation7 + $0xd0] sm:$0xf]
    %v148 = vld [vmem:[#allocation7 + $0xd4] sm:$0xf]
    %v149 = vld [vmem:[#allocation7 + $0xd8] sm:$0xf]
    %v150 = vld [vmem:[#allocation7 + $0xdc] sm:$0xf]
    %v151 = vld [vmem:[#allocation7 + $0xe0] sm:$0xf]
    %v152 = vld [vmem:[#allocation7 + $0xe4] sm:$0xf]
    %v153 = vld [vmem:[#allocation7 + $0xe8] sm:$0xf]
    %v154 = vld [vmem:[#allocation7 + $0xec] sm:$0xf]
    %v155 = vld [vmem:[#allocation7 + $0xf0] sm:$0xf]
    %v156 = vld [vmem:[#allocation7 + $0xf4] sm:$0xf]
    %v157 = vld [vmem:[#allocation7 + $0xf8] sm:$0xf]
    %v158 = vld [vmem:[#allocation7 + $0xfc] sm:$0xf]
    %v159 = vld [vmem:[#allocation7 + $0x100] sm:$0xf]
    %v160 = vld [vmem:[#allocation7 + $0x104] sm:$0xf]
    %v161 = vld [vmem:[#allocation7 + $0x108] sm:$0xf]
    %v162 = vld [vmem:[#allocation7 + $0x10c] sm:$0xf]
    %v163 = vld [vmem:[#allocation7 + $0x110] sm:$0xf]
    %v164 = vld [vmem:[#allocation7 + $0x114] sm:$0xf]
    %v165 = vld [vmem:[#allocation7 + $0x118] sm:$0xf]
    %v166 = vld [vmem:[#allocation7 + $0x11c] sm:$0xf]
    %v167 = vld [vmem:[#allocation7 + $0x120] sm:$0xf]
    %v168 = vld [vmem:[#allocation7 + $0x124] sm:$0xf]
    %v169 = vld [vmem:[#allocation7 + $0x128] sm:$0xf]
    %v170 = vld [vmem:[#allocation7 + $0x12c] sm:$0xf]
    %v171 = vld [vmem:[#allocation7 + $0x130] sm:$0xf]
    %v172 = vld [vmem:[#allocation7 + $0x134] sm:$0xf]
    %v173 = vld [vmem:[#allocation7 + $0x138] sm:$0xf]
    %v174 = vld [vmem:[#allocation7 + $0x13c] sm:$0xf]
    %v175 = vld [vmem:[#allocation7 + $0x140] sm:$0xf]
    %v176 = vld [vmem:[#allocation7 + $0x144] sm:$0xf]
    %v177 = vld [vmem:[#allocation7 + $0x148] sm:$0xf]
    %v178 = vld [vmem:[#allocation7 + $0x14c] sm:$0xf]
    %v179 = vld [vmem:[#allocation7 + $0x150] sm:$0xf]
    %v180 = vld [vmem:[#allocation7 + $0x154] sm:$0xf]
    %v181 = vld [vmem:[#allocation7 + $0x158] sm:$0xf]
    %v182 = vld [vmem:[#allocation7 + $0x15c] sm:$0xf]
    %v183 = vld [vmem:[#allocation7 + $0x160] sm:$0xf]
    %v184 = vld [vmem:[#allocation7 + $0x164] sm:$0xf]
    %v185 = vld [vmem:[#allocation7 + $0x168] sm:$0xf]
    %v186 = vld [vmem:[#allocation7 + $0x16c] sm:$0xf]
    %v187 = vld [vmem:[#allocation7 + $0x170] sm:$0xf]
    %v188 = vld [vmem:[#allocation7 + $0x174] sm:$0xf]
    %v189 = vld [vmem:[#allocation7 + $0x178] sm:$0xf]
    %v190 = vld [vmem:[#allocation7 + $0x17c] sm:$0xf]
    %v191 = vld [vmem:[#allocation7 + $0x180] sm:$0xf]
    %v192 = vld [vmem:[#allocation7 + $0x184] sm:$0xf]
    %v193 = vld [vmem:[#allocation7 + $0x188] sm:$0xf]
    %v194 = vld [vmem:[#allocation7 + $0x18c] sm:$0xf]
    %v195 = vld [vmem:[#allocation7 + $0x190] sm:$0xf]
    %v196 = vld [vmem:[#allocation7 + $0x194] sm:$0xf]
    %v197 = vld [vmem:[#allocation7 + $0x198] sm:$0xf]
    %v198 = vld [vmem:[#allocation7 + $0x19c] sm:$0xf]
    %v199 = vld [vmem:[#allocation7 + $0x1a0] sm:$0xf]
    %v200 = vld [vmem:[#allocation7 + $0x1a4] sm:$0xf]
    %v201 = vld [vmem:[#allocation7 + $0x1a8] sm:$0xf]
    %v202 = vld [vmem:[#allocation7 + $0x1ac] sm:$0xf]
    %v203 = vld [vmem:[#allocation7 + $0x1b0] sm:$0xf]
    %v204 = vld [vmem:[#allocation7 + $0x1b4] sm:$0xf]
    %v205 = vld [vmem:[#allocation7 + $0x1b8] sm:$0xf]
    %v206 = vld [vmem:[#allocation7 + $0x1bc] sm:$0xf]
    %v207 = vld [vmem:[#allocation7 + $0x1c0] sm:$0xf]
    %v208 = vld [vmem:[#allocation7 + $0x1c4] sm:$0xf]
    %v209 = vld [vmem:[#allocation7 + $0x1c8] sm:$0xf]
    %v210 = vld [vmem:[#allocation7 + $0x1cc] sm:$0xf]
    %v211 = vld [vmem:[#allocation7 + $0x1d0] sm:$0xf]
    %v212 = vld [vmem:[#allocation7 + $0x1d4] sm:$0xf]
    %v213 = vld [vmem:[#allocation7 + $0x1d8] sm:$0xf]
    %v214 = vld [vmem:[#allocation7 + $0x1dc] sm:$0xf]
    %v215 = vld [vmem:[#allocation7 + $0x1e0] sm:$0xf]
    %v216 = vld [vmem:[#allocation7 + $0x1e4] sm:$0xf]
    %v217 = vld [vmem:[#allocation7 + $0x1e8] sm:$0xf]
    %v218 = vld [vmem:[#allocation7 + $0x1ec] sm:$0xf]
    %v219 = vld [vmem:[#allocation7 + $0x1f0] sm:$0xf]
    %v220 = vld [vmem:[#allocation7 + $0x1f4] sm:$0xf]
    %v221 = vld [vmem:[#allocation7 + $0x1f8] sm:$0xf]
    %v222 = vld [vmem:[#allocation7 + $0x1fc] sm:$0xf]
    %v223 = vld [vmem:[%s4] sm:$0x1]
    %v224 = vperm.slane %v223, 0
    %v229 = vunpack.c.l.b16 %v87
    %v230 = vunpack.c.h.b16 %v87
    %v231 = vunpack.c.l.b16 %v88
    %v232 = vunpack.c.h.b16 %v88
    %v233 = vunpack.c.l.b16 %v89
    %v234 = vunpack.c.h.b16 %v89
    %v235 = vunpack.c.l.b16 %v90
    %v236 = vunpack.c.h.b16 %v90
    %v237 = vpack.c.b16 %v229, %v229
    %v238 = vpack.c.b16 %v230, %v230
    %v239 = vpack.c.b16 %v231, %v231
    %v240 = vpack.c.b16 %v232, %v232
    %v241 = vpack.c.b16 %v233, %v233
    %v242 = vpack.c.b16 %v234, %v234
    %v243 = vpack.c.b16 %v235, %v235
    %v244 = vpack.c.b16 %v236, %v236
    %v381 = vunpack.c.l.b16 %v95
    %v382 = vunpack.c.l.b16 %v96
    %v383 = vunpack.c.l.b16 %v97
    %v384 = vunpack.c.l.b16 %v98
    %v385 = vunpack.c.l.b16 %v99
    %v386 = vunpack.c.l.b16 %v100
    %v387 = vunpack.c.l.b16 %v101
    %v388 = vunpack.c.l.b16 %v102
    %v389 = vunpack.c.l.b16 %v103
    %v390 = vunpack.c.l.b16 %v104
    %v391 = vunpack.c.l.b16 %v105
    %v392 = vunpack.c.l.b16 %v106
    %v393 = vunpack.c.l.b16 %v107
    %v394 = vunpack.c.l.b16 %v108
    %v395 = vunpack.c.l.b16 %v109
    %v396 = vunpack.c.l.b16 %v110
    %v397 = vunpack.c.l.b16 %v111
    %v398 = vunpack.c.l.b16 %v112
    %v399 = vunpack.c.l.b16 %v113
    %v400 = vunpack.c.l.b16 %v114
    %v401 = vunpack.c.l.b16 %v115
    %v402 = vunpack.c.l.b16 %v116
    %v403 = vunpack.c.l.b16 %v117
    %v404 = vunpack.c.l.b16 %v118
    %v405 = vunpack.c.l.b16 %v119
    %v406 = vunpack.c.l.b16 %v120
    %v407 = vunpack.c.l.b16 %v121
    %v408 = vunpack.c.l.b16 %v122
    %v409 = vunpack.c.l.b16 %v123
    %v410 = vunpack.c.l.b16 %v124
    %v411 = vunpack.c.l.b16 %v125
    %v412 = vunpack.c.l.b16 %v126
    %v413 = vunpack.c.l.b16 %v127
    %v414 = vunpack.c.l.b16 %v128
    %v415 = vunpack.c.l.b16 %v129
    %v416 = vunpack.c.l.b16 %v130
    %v417 = vunpack.c.l.b16 %v131
    %v418 = vunpack.c.l.b16 %v132
    %v419 = vunpack.c.l.b16 %v133
    %v420 = vunpack.c.l.b16 %v134
    %v421 = vunpack.c.l.b16 %v135
    %v422 = vunpack.c.l.b16 %v136
    %v423 = vunpack.c.l.b16 %v137
    %v424 = vunpack.c.l.b16 %v138
    %v425 = vunpack.c.l.b16 %v139
    %v426 = vunpack.c.l.b16 %v140
    %v427 = vunpack.c.l.b16 %v141
    %v428 = vunpack.c.l.b16 %v142
    %v429 = vunpack.c.l.b16 %v143
    %v430 = vunpack.c.l.b16 %v144
    %v431 = vunpack.c.l.b16 %v145
    %v432 = vunpack.c.l.b16 %v146
    %v433 = vunpack.c.l.b16 %v147
    %v434 = vunpack.c.l.b16 %v148
    %v435 = vunpack.c.l.b16 %v149
    %v436 = vunpack.c.l.b16 %v150
    %v437 = vunpack.c.l.b16 %v151
    %v438 = vunpack.c.l.b16 %v152
    %v439 = vunpack.c.l.b16 %v153
    %v440 = vunpack.c.l.b16 %v154
    %v441 = vunpack.c.l.b16 %v155
    %v442 = vunpack.c.l.b16 %v156
    %v443 = vunpack.c.l.b16 %v157
    %v444 = vunpack.c.l.b16 %v158
    %v445 = vunpack.c.l.b16 %v159
    %v446 = vunpack.c.l.b16 %v160
    %v447 = vunpack.c.l.b16 %v161
    %v448 = vunpack.c.l.b16 %v162
    %v449 = vunpack.c.l.b16 %v163
    %v450 = vunpack.c.l.b16 %v164
    %v451 = vunpack.c.l.b16 %v165
    %v452 = vunpack.c.l.b16 %v166
    %v453 = vunpack.c.l.b16 %v167
    %v454 = vunpack.c.l.b16 %v168
    %v455 = vunpack.c.l.b16 %v169
    %v456 = vunpack.c.l.b16 %v170
    %v457 = vunpack.c.l.b16 %v171
    %v458 = vunpack.c.l.b16 %v172
    %v459 = vunpack.c.l.b16 %v173
    %v460 = vunpack.c.l.b16 %v174
    %v461 = vunpack.c.l.b16 %v175
    %v462 = vunpack.c.l.b16 %v176
    %v463 = vunpack.c.l.b16 %v177
    %v464 = vunpack.c.l.b16 %v178
    %v465 = vunpack.c.l.b16 %v179
    %v466 = vunpack.c.l.b16 %v180
    %v467 = vunpack.c.l.b16 %v181
    %v468 = vunpack.c.l.b16 %v182
    %v469 = vunpack.c.l.b16 %v183
    %v470 = vunpack.c.l.b16 %v184
    %v471 = vunpack.c.l.b16 %v185
    %v472 = vunpack.c.l.b16 %v186
    %v473 = vunpack.c.l.b16 %v187
    %v474 = vunpack.c.l.b16 %v188
    %v475 = vunpack.c.l.b16 %v189
    %v476 = vunpack.c.l.b16 %v190
    %v477 = vunpack.c.l.b16 %v191
    %v478 = vunpack.c.l.b16 %v192
    %v479 = vunpack.c.l.b16 %v193
    %v480 = vunpack.c.l.b16 %v194
    %v481 = vunpack.c.l.b16 %v195
    %v482 = vunpack.c.l.b16 %v196
    %v483 = vunpack.c.l.b16 %v197
    %v484 = vunpack.c.l.b16 %v198
    %v485 = vunpack.c.l.b16 %v199
    %v486 = vunpack.c.l.b16 %v200
    %v487 = vunpack.c.l.b16 %v201
    %v488 = vunpack.c.l.b16 %v202
    %v489 = vunpack.c.l.b16 %v203
    %v490 = vunpack.c.l.b16 %v204
    %v491 = vunpack.c.l.b16 %v205
    %v492 = vunpack.c.l.b16 %v206
    %v493 = vunpack.c.l.b16 %v207
    %v494 = vunpack.c.l.b16 %v208
    %v495 = vunpack.c.l.b16 %v209
    %v496 = vunpack.c.l.b16 %v210
    %v497 = vunpack.c.l.b16 %v211
    %v498 = vunpack.c.l.b16 %v212
    %v499 = vunpack.c.l.b16 %v213
    %v500 = vunpack.c.l.b16 %v214
    %v501 = vunpack.c.l.b16 %v215
    %v502 = vunpack.c.l.b16 %v216
    %v503 = vunpack.c.l.b16 %v217
    %v504 = vunpack.c.l.b16 %v218
    %v505 = vunpack.c.l.b16 %v219
    %v506 = vunpack.c.l.b16 %v220
    %v507 = vunpack.c.l.b16 %v221
    %v508 = vunpack.c.l.b16 %v222
    %v509 = vpack.c.b16 %v382, %v381
    %v510 = vpack.c.b16 %v384, %v383
    %v511 = vpack.c.b16 %v386, %v385
    %v512 = vpack.c.b16 %v388, %v387
    %v513 = vpack.c.b16 %v390, %v389
    %v514 = vpack.c.b16 %v392, %v391
    %v515 = vpack.c.b16 %v394, %v393
    %v516 = vpack.c.b16 %v396, %v395
    %v517 = vpack.c.b16 %v398, %v397
    %v518 = vpack.c.b16 %v400, %v399
    %v519 = vpack.c.b16 %v402, %v401
    %v520 = vpack.c.b16 %v404, %v403
    %v521 = vpack.c.b16 %v406, %v405
    %v522 = vpack.c.b16 %v408, %v407
    %v523 = vpack.c.b16 %v410, %v409
    %v524 = vpack.c.b16 %v412, %v411
    %v525 = vpack.c.b16 %v414, %v413
    %v526 = vpack.c.b16 %v416, %v415
    %v527 = vpack.c.b16 %v418, %v417
    %v528 = vpack.c.b16 %v420, %v419
    %v529 = vpack.c.b16 %v422, %v421
    %v530 = vpack.c.b16 %v424, %v423
    %v531 = vpack.c.b16 %v426, %v425
    %v532 = vpack.c.b16 %v428, %v427
    %v533 = vpack.c.b16 %v430, %v429
    %v534 = vpack.c.b16 %v432, %v431
    %v535 = vpack.c.b16 %v434, %v433
    %v536 = vpack.c.b16 %v436, %v435
    %v537 = vpack.c.b16 %v438, %v437
    %v538 = vpack.c.b16 %v440, %v439
    %v539 = vpack.c.b16 %v442, %v441
    %v540 = vpack.c.b16 %v444, %v443
    %v541 = vpack.c.b16 %v446, %v445
    %v542 = vpack.c.b16 %v448, %v447
    %v543 = vpack.c.b16 %v450, %v449
    %v544 = vpack.c.b16 %v452, %v451
    %v545 = vpack.c.b16 %v454, %v453
    %v546 = vpack.c.b16 %v456, %v455
    %v547 = vpack.c.b16 %v458, %v457
    %v548 = vpack.c.b16 %v460, %v459
    %v549 = vpack.c.b16 %v462, %v461
    %v550 = vpack.c.b16 %v464, %v463
    %v551 = vpack.c.b16 %v466, %v465
    %v552 = vpack.c.b16 %v468, %v467
    %v553 = vpack.c.b16 %v470, %v469
    %v554 = vpack.c.b16 %v472, %v471
    %v555 = vpack.c.b16 %v474, %v473
    %v556 = vpack.c.b16 %v476, %v475
    %v557 = vpack.c.b16 %v478, %v477
    %v558 = vpack.c.b16 %v480, %v479
    %v559 = vpack.c.b16 %v482, %v481
    %v560 = vpack.c.b16 %v484, %v483
    %v561 = vpack.c.b16 %v486, %v485
    %v562 = vpack.c.b16 %v488, %v487
    %v563 = vpack.c.b16 %v490, %v489
    %v564 = vpack.c.b16 %v492, %v491
    %v565 = vpack.c.b16 %v494, %v493
    %v566 = vpack.c.b16 %v496, %v495
    %v567 = vpack.c.b16 %v498, %v497
    %v568 = vpack.c.b16 %v500, %v499
    %v569 = vpack.c.b16 %v502, %v501
    %v570 = vpack.c.b16 %v504, %v503
    %v571 = vpack.c.b16 %v506, %v505
    %v572 = vpack.c.b16 %v508, %v507
    %637 = vmatpush.bf16.msra.mxu0 %v516
    %638 = vmatpush.bf16.msra.mxu0 %v515
    %639 = vmatpush.bf16.msra.mxu0 %v514
    %640 = vmatpush.bf16.msra.mxu0 %v513
    %641 = vmatpush.bf16.msra.mxu0 %v512
    %642 = vmatpush.bf16.msra.mxu0 %v511
    %643 = vmatpush.bf16.msra.mxu0 %v510
    %644 = vmatpush.bf16.msra.mxu0 %v509
    %645 = vmatmul.bf16.gmra.mxu0 %v237
    %v646 = vpop.f32.mrf.mxu0
    %v647 = vadd.f32 %v224, %v646
    %v648 = vpop.f32.mrf.mxu0
    %649 = vdwg.mxu0
    %650 = vmatpush.bf16.msra.mxu0 %v524
    %651 = vmatpush.bf16.msra.mxu0 %v523
    %652 = vmatpush.bf16.msra.mxu0 %v522
    %653 = vmatpush.bf16.msra.mxu0 %v521
    %654 = vmatpush.bf16.msra.mxu0 %v520
    %655 = vmatpush.bf16.msra.mxu0 %v519
    %656 = vmatpush.bf16.msra.mxu0 %v518
    %657 = vmatpush.bf16.msra.mxu0 %v517
    %658 = vmatmul.bf16.gmra.mxu0 %v238
    %v659 = vpop.f32.mrf.mxu0
    %v660 = vadd.f32 %v647, %v659
    %v661 = vpop.f32.mrf.mxu0
    %662 = vdwg.mxu0
    %663 = vmatpush.bf16.msra.mxu0 %v532
    %664 = vmatpush.bf16.msra.mxu0 %v531
    %665 = vmatpush.bf16.msra.mxu0 %v530
    %666 = vmatpush.bf16.msra.mxu0 %v529
    %667 = vmatpush.bf16.msra.mxu0 %v528
    %668 = vmatpush.bf16.msra.mxu0 %v527
    %669 = vmatpush.bf16.msra.mxu0 %v526
    %670 = vmatpush.bf16.msra.mxu0 %v525
    %671 = vmatmul.bf16.gmra.mxu0 %v239
    %v672 = vpop.f32.mrf.mxu0
    %v673 = vadd.f32 %v660, %v672
    %v674 = vpop.f32.mrf.mxu0
    %675 = vdwg.mxu0
    %676 = vmatpush.bf16.msra.mxu0 %v540
    %677 = vmatpush.bf16.msra.mxu0 %v539
    %678 = vmatpush.bf16.msra.mxu0 %v538
    %679 = vmatpush.bf16.msra.mxu0 %v537
    %680 = vmatpush.bf16.msra.mxu0 %v536
    %681 = vmatpush.bf16.msra.mxu0 %v535
    %682 = vmatpush.bf16.msra.mxu0 %v534
    %683 = vmatpush.bf16.msra.mxu0 %v533
    %684 = vmatmul.bf16.gmra.mxu0 %v240
    %v685 = vpop.f32.mrf.mxu0
    %v686 = vadd.f32 %v673, %v685
    %v687 = vpop.f32.mrf.mxu0
    %688 = vdwg.mxu0
    %689 = vmatpush.bf16.msra.mxu0 %v548
    %690 = vmatpush.bf16.msra.mxu0 %v547
    %691 = vmatpush.bf16.msra.mxu0 %v546
    %692 = vmatpush.bf16.msra.mxu0 %v545
    %693 = vmatpush.bf16.msra.mxu0 %v544
    %694 = vmatpush.bf16.msra.mxu0 %v543
    %695 = vmatpush.bf16.msra.mxu0 %v542
    %696 = vmatpush.bf16.msra.mxu0 %v541
    %697 = vmatmul.bf16.gmra.mxu0 %v241
    %v698 = vpop.f32.mrf.mxu0
    %v699 = vadd.f32 %v686, %v698
    %v700 = vpop.f32.mrf.mxu0
    %701 = vdwg.mxu0
    %702 = vmatpush.bf16.msra.mxu0 %v556
    %703 = vmatpush.bf16.msra.mxu0 %v555
    %704 = vmatpush.bf16.msra.mxu0 %v554
    %705 = vmatpush.bf16.msra.mxu0 %v553
    %706 = vmatpush.bf16.msra.mxu0 %v552
    %707 = vmatpush.bf16.msra.mxu0 %v551
    %708 = vmatpush.bf16.msra.mxu0 %v550
    %709 = vmatpush.bf16.msra.mxu0 %v549
    %710 = vmatmul.bf16.gmra.mxu0 %v242
    %v711 = vpop.f32.mrf.mxu0
    %v712 = vadd.f32 %v699, %v711
    %v713 = vpop.f32.mrf.mxu0
    %714 = vdwg.mxu0
    %715 = vmatpush.bf16.msra.mxu0 %v564
    %716 = vmatpush.bf16.msra.mxu0 %v563
    %717 = vmatpush.bf16.msra.mxu0 %v562
    %718 = vmatpush.bf16.msra.mxu0 %v561
    %719 = vmatpush.bf16.msra.mxu0 %v560
    %720 = vmatpush.bf16.msra.mxu0 %v559
    %721 = vmatpush.bf16.msra.mxu0 %v558
    %722 = vmatpush.bf16.msra.mxu0 %v557
    %723 = vmatmul.bf16.gmra.mxu0 %v243
    %v724 = vpop.f32.mrf.mxu0
    %v725 = vadd.f32 %v712, %v724
    %v726 = vpop.f32.mrf.mxu0
    %727 = vdwg.mxu0
    %728 = vmatpush.bf16.msra.mxu0 %v572
    %729 = vmatpush.bf16.msra.mxu0 %v571
    %730 = vmatpush.bf16.msra.mxu0 %v570
    %731 = vmatpush.bf16.msra.mxu0 %v569
    %732 = vmatpush.bf16.msra.mxu0 %v568
    %733 = vmatpush.bf16.msra.mxu0 %v567
    %734 = vmatpush.bf16.msra.mxu0 %v566
    %735 = vmatpush.bf16.msra.mxu0 %v565
    %736 = vmatmul.bf16.gmra.mxu0 %v244
    %v737 = vpop.f32.mrf.mxu0
    %v738 = vadd.f32 %v725, %v737
    %v739 = vpop.f32.mrf.mxu0
    %740 = vdwg.mxu0
    %v741 = vmax.f32 %v738, 0.0
    %v742 = vld [vmem:[#allocation8] sm:$0xf]
    %v743 = vld [vmem:[#allocation8 + $0x4] sm:$0xf]
    %v744 = vld [vmem:[#allocation8 + $0x8] sm:$0xf]
    %v745 = vld [vmem:[#allocation8 + $0xc] sm:$0xf]
    %v746 = vld [vmem:[#allocation8 + $0x10] sm:$0xf]
    %v747 = vld [vmem:[#allocation8 + $0x14] sm:$0xf]
    %v748 = vld [vmem:[#allocation8 + $0x18] sm:$0xf]
    %v749 = vld [vmem:[#allocation8 + $0x1c] sm:$0xf]
    %v750 = vld [vmem:[#allocation8 + $0x20] sm:$0xf]
    %v751 = vld [vmem:[#allocation8 + $0x24] sm:$0xf]
    %v752 = vld [vmem:[#allocation8 + $0x28] sm:$0xf]
    %v753 = vld [vmem:[#allocation8 + $0x2c] sm:$0xf]
    %v754 = vld [vmem:[#allocation8 + $0x30] sm:$0xf]
    %v755 = vld [vmem:[#allocation8 + $0x34] sm:$0xf]
    %v756 = vld [vmem:[#allocation8 + $0x38] sm:$0xf]
    %v757 = vld [vmem:[#allocation8 + $0x3c] sm:$0xf]
    %v758 = vld [vmem:[#allocation8 + $0x40] sm:$0xf]
    %v759 = vld [vmem:[#allocation8 + $0x44] sm:$0xf]
    %v760 = vld [vmem:[#allocation8 + $0x48] sm:$0xf]
    %v761 = vld [vmem:[#allocation8 + $0x4c] sm:$0xf]
    %v762 = vld [vmem:[#allocation8 + $0x50] sm:$0xf]
    %v763 = vld [vmem:[#allocation8 + $0x54] sm:$0xf]
    %v764 = vld [vmem:[#allocation8 + $0x58] sm:$0xf]
    %v765 = vld [vmem:[#allocation8 + $0x5c] sm:$0xf]
    %v766 = vld [vmem:[#allocation8 + $0x60] sm:$0xf]
    %v767 = vld [vmem:[#allocation8 + $0x64] sm:$0xf]
    %v768 = vld [vmem:[#allocation8 + $0x68] sm:$0xf]
    %v769 = vld [vmem:[#allocation8 + $0x6c] sm:$0xf]
    %v770 = vld [vmem:[#allocation8 + $0x70] sm:$0xf]
    %v771 = vld [vmem:[#allocation8 + $0x74] sm:$0xf]
    %v772 = vld [vmem:[#allocation8 + $0x78] sm:$0xf]
    %v773 = vld [vmem:[#allocation8 + $0x7c] sm:$0xf]
    %v774 = vld [vmem:[#allocation8 + $0x80] sm:$0xf]
    %v775 = vld [vmem:[#allocation8 + $0x84] sm:$0xf]
    %v776 = vld [vmem:[#allocation8 + $0x88] sm:$0xf]
    %v777 = vld [vmem:[#allocation8 + $0x8c] sm:$0xf]
    %v778 = vld [vmem:[#allocation8 + $0x90] sm:$0xf]
    %v779 = vld [vmem:[#allocation8 + $0x94] sm:$0xf]
    %v780 = vld [vmem:[#allocation8 + $0x98] sm:$0xf]
    %v781 = vld [vmem:[#allocation8 + $0x9c] sm:$0xf]
    %v782 = vld [vmem:[#allocation8 + $0xa0] sm:$0xf]
    %v783 = vld [vmem:[#allocation8 + $0xa4] sm:$0xf]
    %v784 = vld [vmem:[#allocation8 + $0xa8] sm:$0xf]
    %v785 = vld [vmem:[#allocation8 + $0xac] sm:$0xf]
    %v786 = vld [vmem:[#allocation8 + $0xb0] sm:$0xf]
    %v787 = vld [vmem:[#allocation8 + $0xb4] sm:$0xf]
    %v788 = vld [vmem:[#allocation8 + $0xb8] sm:$0xf]
    %v789 = vld [vmem:[#allocation8 + $0xbc] sm:$0xf]
    %v790 = vld [vmem:[#allocation8 + $0xc0] sm:$0xf]
    %v791 = vld [vmem:[#allocation8 + $0xc4] sm:$0xf]
    %v792 = vld [vmem:[#allocation8 + $0xc8] sm:$0xf]
    %v793 = vld [vmem:[#allocation8 + $0xcc] sm:$0xf]
    %v794 = vld [vmem:[#allocation8 + $0xd0] sm:$0xf]
    %v795 = vld [vmem:[#allocation8 + $0xd4] sm:$0xf]
    %v796 = vld [vmem:[#allocation8 + $0xd8] sm:$0xf]
    %v797 = vld [vmem:[#allocation8 + $0xdc] sm:$0xf]
    %v798 = vld [vmem:[#allocation8 + $0xe0] sm:$0xf]
    %v799 = vld [vmem:[#allocation8 + $0xe4] sm:$0xf]
    %v800 = vld [vmem:[#allocation8 + $0xe8] sm:$0xf]
    %v801 = vld [vmem:[#allocation8 + $0xec] sm:$0xf]
    %v802 = vld [vmem:[#allocation8 + $0xf0] sm:$0xf]
    %v803 = vld [vmem:[#allocation8 + $0xf4] sm:$0xf]
    %v804 = vld [vmem:[#allocation8 + $0xf8] sm:$0xf]
    %v805 = vld [vmem:[#allocation8 + $0xfc] sm:$0xf]
    %v806 = vld [vmem:[#allocation8 + $0x100] sm:$0xf]
    %v807 = vld [vmem:[#allocation8 + $0x104] sm:$0xf]
    %v808 = vld [vmem:[#allocation8 + $0x108] sm:$0xf]
    %v809 = vld [vmem:[#allocation8 + $0x10c] sm:$0xf]
    %v810 = vld [vmem:[#allocation8 + $0x110] sm:$0xf]
    %v811 = vld [vmem:[#allocation8 + $0x114] sm:$0xf]
    %v812 = vld [vmem:[#allocation8 + $0x118] sm:$0xf]
    %v813 = vld [vmem:[#allocation8 + $0x11c] sm:$0xf]
    %v814 = vld [vmem:[#allocation8 + $0x120] sm:$0xf]
    %v815 = vld [vmem:[#allocation8 + $0x124] sm:$0xf]
    %v816 = vld [vmem:[#allocation8 + $0x128] sm:$0xf]
    %v817 = vld [vmem:[#allocation8 + $0x12c] sm:$0xf]
    %v818 = vld [vmem:[#allocation8 + $0x130] sm:$0xf]
    %v819 = vld [vmem:[#allocation8 + $0x134] sm:$0xf]
    %v820 = vld [vmem:[#allocation8 + $0x138] sm:$0xf]
    %v821 = vld [vmem:[#allocation8 + $0x13c] sm:$0xf]
    %v822 = vld [vmem:[#allocation8 + $0x140] sm:$0xf]
    %v823 = vld [vmem:[#allocation8 + $0x144] sm:$0xf]
    %v824 = vld [vmem:[#allocation8 + $0x148] sm:$0xf]
    %v825 = vld [vmem:[#allocation8 + $0x14c] sm:$0xf]
    %v826 = vld [vmem:[#allocation8 + $0x150] sm:$0xf]
    %v827 = vld [vmem:[#allocation8 + $0x154] sm:$0xf]
    %v828 = vld [vmem:[#allocation8 + $0x158] sm:$0xf]
    %v829 = vld [vmem:[#allocation8 + $0x15c] sm:$0xf]
    %v830 = vld [vmem:[#allocation8 + $0x160] sm:$0xf]
    %v831 = vld [vmem:[#allocation8 + $0x164] sm:$0xf]
    %v832 = vld [vmem:[#allocation8 + $0x168] sm:$0xf]
    %v833 = vld [vmem:[#allocation8 + $0x16c] sm:$0xf]
    %v834 = vld [vmem:[#allocation8 + $0x170] sm:$0xf]
    %v835 = vld [vmem:[#allocation8 + $0x174] sm:$0xf]
    %v836 = vld [vmem:[#allocation8 + $0x178] sm:$0xf]
    %v837 = vld [vmem:[#allocation8 + $0x17c] sm:$0xf]
    %v838 = vld [vmem:[#allocation8 + $0x180] sm:$0xf]
    %v839 = vld [vmem:[#allocation8 + $0x184] sm:$0xf]
    %v840 = vld [vmem:[#allocation8 + $0x188] sm:$0xf]
    %v841 = vld [vmem:[#allocation8 + $0x18c] sm:$0xf]
    %v842 = vld [vmem:[#allocation8 + $0x190] sm:$0xf]
    %v843 = vld [vmem:[#allocation8 + $0x194] sm:$0xf]
    %v844 = vld [vmem:[#allocation8 + $0x198] sm:$0xf]
    %v845 = vld [vmem:[#allocation8 + $0x19c] sm:$0xf]
    %v846 = vld [vmem:[#allocation8 + $0x1a0] sm:$0xf]
    %v847 = vld [vmem:[#allocation8 + $0x1a4] sm:$0xf]
    %v848 = vld [vmem:[#allocation8 + $0x1a8] sm:$0xf]
    %v849 = vld [vmem:[#allocation8 + $0x1ac] sm:$0xf]
    %v850 = vld [vmem:[#allocation8 + $0x1b0] sm:$0xf]
    %v851 = vld [vmem:[#allocation8 + $0x1b4] sm:$0xf]
    %v852 = vld [vmem:[#allocation8 + $0x1b8] sm:$0xf]
    %v853 = vld [vmem:[#allocation8 + $0x1bc] sm:$0xf]
    %v854 = vld [vmem:[#allocation8 + $0x1c0] sm:$0xf]
    %v855 = vld [vmem:[#allocation8 + $0x1c4] sm:$0xf]
    %v856 = vld [vmem:[#allocation8 + $0x1c8] sm:$0xf]
    %v857 = vld [vmem:[#allocation8 + $0x1cc] sm:$0xf]
    %v858 = vld [vmem:[#allocation8 + $0x1d0] sm:$0xf]
    %v859 = vld [vmem:[#allocation8 + $0x1d4] sm:$0xf]
    %v860 = vld [vmem:[#allocation8 + $0x1d8] sm:$0xf]
    %v861 = vld [vmem:[#allocation8 + $0x1dc] sm:$0xf]
    %v862 = vld [vmem:[#allocation8 + $0x1e0] sm:$0xf]
    %v863 = vld [vmem:[#allocation8 + $0x1e4] sm:$0xf]
    %v864 = vld [vmem:[#allocation8 + $0x1e8] sm:$0xf]
    %v865 = vld [vmem:[#allocation8 + $0x1ec] sm:$0xf]
    %v866 = vld [vmem:[#allocation8 + $0x1f0] sm:$0xf]
    %v867 = vld [vmem:[#allocation8 + $0x1f4] sm:$0xf]
    %v868 = vld [vmem:[#allocation8 + $0x1f8] sm:$0xf]
    %v869 = vld [vmem:[#allocation8 + $0x1fc] sm:$0xf]
    %v870 = vld [vmem:[%s4 + $0x1] sm:$0x1]
    %v871 = vperm.slane %v870, 0
    %v876 = vunpack.c.l.b16 %v91
    %v877 = vunpack.c.h.b16 %v91
    %v878 = vunpack.c.l.b16 %v92
    %v879 = vunpack.c.h.b16 %v92
    %v880 = vunpack.c.l.b16 %v93
    %v881 = vunpack.c.h.b16 %v93
    %v882 = vunpack.c.l.b16 %v94
    %v883 = vunpack.c.h.b16 %v94
    %v884 = vpack.c.b16 %v876, %v876
    %v885 = vpack.c.b16 %v877, %v877
    %v886 = vpack.c.b16 %v878, %v878
    %v887 = vpack.c.b16 %v879, %v879
    %v888 = vpack.c.b16 %v880, %v880
    %v889 = vpack.c.b16 %v881, %v881
    %v890 = vpack.c.b16 %v882, %v882
    %v891 = vpack.c.b16 %v883, %v883
    %v1028 = vunpack.c.l.b16 %v742
    %v1029 = vunpack.c.l.b16 %v743
    %v1030 = vunpack.c.l.b16 %v744
    %v1031 = vunpack.c.l.b16 %v745
    %v1032 = vunpack.c.l.b16 %v746
    %v1033 = vunpack.c.l.b16 %v747
    %v1034 = vunpack.c.l.b16 %v748
    %v1035 = vunpack.c.l.b16 %v749
    %v1036 = vunpack.c.l.b16 %v750
    %v1037 = vunpack.c.l.b16 %v751
    %v1038 = vunpack.c.l.b16 %v752
    %v1039 = vunpack.c.l.b16 %v753
    %v1040 = vunpack.c.l.b16 %v754
    %v1041 = vunpack.c.l.b16 %v755
    %v1042 = vunpack.c.l.b16 %v756
    %v1043 = vunpack.c.l.b16 %v757
    %v1044 = vunpack.c.l.b16 %v758
    %v1045 = vunpack.c.l.b16 %v759
    %v1046 = vunpack.c.l.b16 %v760
    %v1047 = vunpack.c.l.b16 %v761
    %v1048 = vunpack.c.l.b16 %v762
    %v1049 = vunpack.c.l.b16 %v763
    %v1050 = vunpack.c.l.b16 %v764
    %v1051 = vunpack.c.l.b16 %v765
    %v1052 = vunpack.c.l.b16 %v766
    %v1053 = vunpack.c.l.b16 %v767
    %v1054 = vunpack.c.l.b16 %v768
    %v1055 = vunpack.c.l.b16 %v769
    %v1056 = vunpack.c.l.b16 %v770
    %v1057 = vunpack.c.l.b16 %v771
    %v1058 = vunpack.c.l.b16 %v772
    %v1059 = vunpack.c.l.b16 %v773
    %v1060 = vunpack.c.l.b16 %v774
    %v1061 = vunpack.c.l.b16 %v775
    %v1062 = vunpack.c.l.b16 %v776
    %v1063 = vunpack.c.l.b16 %v777
    %v1064 = vunpack.c.l.b16 %v778
    %v1065 = vunpack.c.l.b16 %v779
    %v1066 = vunpack.c.l.b16 %v780
    %v1067 = vunpack.c.l.b16 %v781
    %v1068 = vunpack.c.l.b16 %v782
    %v1069 = vunpack.c.l.b16 %v783
    %v1070 = vunpack.c.l.b16 %v784
    %v1071 = vunpack.c.l.b16 %v785
    %v1072 = vunpack.c.l.b16 %v786
    %v1073 = vunpack.c.l.b16 %v787
    %v1074 = vunpack.c.l.b16 %v788
    %v1075 = vunpack.c.l.b16 %v789
    %v1076 = vunpack.c.l.b16 %v790
    %v1077 = vunpack.c.l.b16 %v791
    %v1078 = vunpack.c.l.b16 %v792
    %v1079 = vunpack.c.l.b16 %v793
    %v1080 = vunpack.c.l.b16 %v794
    %v1081 = vunpack.c.l.b16 %v795
    %v1082 = vunpack.c.l.b16 %v796
    %v1083 = vunpack.c.l.b16 %v797
    %v1084 = vunpack.c.l.b16 %v798
    %v1085 = vunpack.c.l.b16 %v799
    %v1086 = vunpack.c.l.b16 %v800
    %v1087 = vunpack.c.l.b16 %v801
    %v1088 = vunpack.c.l.b16 %v802
    %v1089 = vunpack.c.l.b16 %v803
    %v1090 = vunpack.c.l.b16 %v804
    %v1091 = vunpack.c.l.b16 %v805
    %v1092 = vunpack.c.l.b16 %v806
    %v1093 = vunpack.c.l.b16 %v807
    %v1094 = vunpack.c.l.b16 %v808
    %v1095 = vunpack.c.l.b16 %v809
    %v1096 = vunpack.c.l.b16 %v810
    %v1097 = vunpack.c.l.b16 %v811
    %v1098 = vunpack.c.l.b16 %v812
    %v1099 = vunpack.c.l.b16 %v813
    %v1100 = vunpack.c.l.b16 %v814
    %v1101 = vunpack.c.l.b16 %v815
    %v1102 = vunpack.c.l.b16 %v816
    %v1103 = vunpack.c.l.b16 %v817
    %v1104 = vunpack.c.l.b16 %v818
    %v1105 = vunpack.c.l.b16 %v819
    %v1106 = vunpack.c.l.b16 %v820
    %v1107 = vunpack.c.l.b16 %v821
    %v1108 = vunpack.c.l.b16 %v822
    %v1109 = vunpack.c.l.b16 %v823
    %v1110 = vunpack.c.l.b16 %v824
    %v1111 = vunpack.c.l.b16 %v825
    %v1112 = vunpack.c.l.b16 %v826
    %v1113 = vunpack.c.l.b16 %v827
    %v1114 = vunpack.c.l.b16 %v828
    %v1115 = vunpack.c.l.b16 %v829
    %v1116 = vunpack.c.l.b16 %v830
    %v1117 = vunpack.c.l.b16 %v831
    %v1118 = vunpack.c.l.b16 %v832
    %v1119 = vunpack.c.l.b16 %v833
    %v1120 = vunpack.c.l.b16 %v834
    %v1121 = vunpack.c.l.b16 %v835
    %v1122 = vunpack.c.l.b16 %v836
    %v1123 = vunpack.c.l.b16 %v837
    %v1124 = vunpack.c.l.b16 %v838
    %v1125 = vunpack.c.l.b16 %v839
    %v1126 = vunpack.c.l.b16 %v840
    %v1127 = vunpack.c.l.b16 %v841
    %v1128 = vunpack.c.l.b16 %v842
    %v1129 = vunpack.c.l.b16 %v843
    %v1130 = vunpack.c.l.b16 %v844
    %v1131 = vunpack.c.l.b16 %v845
    %v1132 = vunpack.c.l.b16 %v846
    %v1133 = vunpack.c.l.b16 %v847
    %v1134 = vunpack.c.l.b16 %v848
    %v1135 = vunpack.c.l.b16 %v849
    %v1136 = vunpack.c.l.b16 %v850
    %v1137 = vunpack.c.l.b16 %v851
    %v1138 = vunpack.c.l.b16 %v852
    %v1139 = vunpack.c.l.b16 %v853
    %v1140 = vunpack.c.l.b16 %v854
    %v1141 = vunpack.c.l.b16 %v855
    %v1142 = vunpack.c.l.b16 %v856
    %v1143 = vunpack.c.l.b16 %v857
    %v1144 = vunpack.c.l.b16 %v858
    %v1145 = vunpack.c.l.b16 %v859
    %v1146 = vunpack.c.l.b16 %v860
    %v1147 = vunpack.c.l.b16 %v861
    %v1148 = vunpack.c.l.b16 %v862
    %v1149 = vunpack.c.l.b16 %v863
    %v1150 = vunpack.c.l.b16 %v864
    %v1151 = vunpack.c.l.b16 %v865
    %v1152 = vunpack.c.l.b16 %v866
    %v1153 = vunpack.c.l.b16 %v867
    %v1154 = vunpack.c.l.b16 %v868
    %v1155 = vunpack.c.l.b16 %v869
    %v1156 = vpack.c.b16 %v1029, %v1028
    %v1157 = vpack.c.b16 %v1031, %v1030
    %v1158 = vpack.c.b16 %v1033, %v1032
    %v1159 = vpack.c.b16 %v1035, %v1034
    %v1160 = vpack.c.b16 %v1037, %v1036
    %v1161 = vpack.c.b16 %v1039, %v1038
    %v1162 = vpack.c.b16 %v1041, %v1040
    %v1163 = vpack.c.b16 %v1043, %v1042
    %v1164 = vpack.c.b16 %v1045, %v1044
    %v1165 = vpack.c.b16 %v1047, %v1046
    %v1166 = vpack.c.b16 %v1049, %v1048
    %v1167 = vpack.c.b16 %v1051, %v1050
    %v1168 = vpack.c.b16 %v1053, %v1052
    %v1169 = vpack.c.b16 %v1055, %v1054
    %v1170 = vpack.c.b16 %v1057, %v1056
    %v1171 = vpack.c.b16 %v1059, %v1058
    %v1172 = vpack.c.b16 %v1061, %v1060
    %v1173 = vpack.c.b16 %v1063, %v1062
    %v1174 = vpack.c.b16 %v1065, %v1064
    %v1175 = vpack.c.b16 %v1067, %v1066
    %v1176 = vpack.c.b16 %v1069, %v1068
    %v1177 = vpack.c.b16 %v1071, %v1070
    %v1178 = vpack.c.b16 %v1073, %v1072
    %v1179 = vpack.c.b16 %v1075, %v1074
    %v1180 = vpack.c.b16 %v1077, %v1076
    %v1181 = vpack.c.b16 %v1079, %v1078
    %v1182 = vpack.c.b16 %v1081, %v1080
    %v1183 = vpack.c.b16 %v1083, %v1082
    %v1184 = vpack.c.b16 %v1085, %v1084
    %v1185 = vpack.c.b16 %v1087, %v1086
    %v1186 = vpack.c.b16 %v1089, %v1088
    %v1187 = vpack.c.b16 %v1091, %v1090
    %v1188 = vpack.c.b16 %v1093, %v1092
    %v1189 = vpack.c.b16 %v1095, %v1094
    %v1190 = vpack.c.b16 %v1097, %v1096
    %v1191 = vpack.c.b16 %v1099, %v1098
    %v1192 = vpack.c.b16 %v1101, %v1100
    %v1193 = vpack.c.b16 %v1103, %v1102
    %v1194 = vpack.c.b16 %v1105, %v1104
    %v1195 = vpack.c.b16 %v1107, %v1106
    %v1196 = vpack.c.b16 %v1109, %v1108
    %v1197 = vpack.c.b16 %v1111, %v1110
    %v1198 = vpack.c.b16 %v1113, %v1112
    %v1199 = vpack.c.b16 %v1115, %v1114
    %v1200 = vpack.c.b16 %v1117, %v1116
    %v1201 = vpack.c.b16 %v1119, %v1118
    %v1202 = vpack.c.b16 %v1121, %v1120
    %v1203 = vpack.c.b16 %v1123, %v1122
    %v1204 = vpack.c.b16 %v1125, %v1124
    %v1205 = vpack.c.b16 %v1127, %v1126
    %v1206 = vpack.c.b16 %v1129, %v1128
    %v1207 = vpack.c.b16 %v1131, %v1130
    %v1208 = vpack.c.b16 %v1133, %v1132
    %v1209 = vpack.c.b16 %v1135, %v1134
    %v1210 = vpack.c.b16 %v1137, %v1136
    %v1211 = vpack.c.b16 %v1139, %v1138
    %v1212 = vpack.c.b16 %v1141, %v1140
    %v1213 = vpack.c.b16 %v1143, %v1142
    %v1214 = vpack.c.b16 %v1145, %v1144
    %v1215 = vpack.c.b16 %v1147, %v1146
    %v1216 = vpack.c.b16 %v1149, %v1148
    %v1217 = vpack.c.b16 %v1151, %v1150
    %v1218 = vpack.c.b16 %v1153, %v1152
    %v1219 = vpack.c.b16 %v1155, %v1154
    %1284 = vmatpush.bf16.msra.mxu0 %v1163
    %1285 = vmatpush.bf16.msra.mxu0 %v1162
    %1286 = vmatpush.bf16.msra.mxu0 %v1161
    %1287 = vmatpush.bf16.msra.mxu0 %v1160
    %1288 = vmatpush.bf16.msra.mxu0 %v1159
    %1289 = vmatpush.bf16.msra.mxu0 %v1158
    %1290 = vmatpush.bf16.msra.mxu0 %v1157
    %1291 = vmatpush.bf16.msra.mxu0 %v1156
    %1292 = vmatmul.bf16.gmra.mxu0 %v884
    %v1293 = vpop.f32.mrf.mxu0
    %v1294 = vadd.f32 %v871, %v1293
    %v1295 = vpop.f32.mrf.mxu0
    %1296 = vdwg.mxu0
    %1297 = vmatpush.bf16.msra.mxu0 %v1171
    %1298 = vmatpush.bf16.msra.mxu0 %v1170
    %1299 = vmatpush.bf16.msra.mxu0 %v1169
    %1300 = vmatpush.bf16.msra.mxu0 %v1168
    %1301 = vmatpush.bf16.msra.mxu0 %v1167
    %1302 = vmatpush.bf16.msra.mxu0 %v1166
    %1303 = vmatpush.bf16.msra.mxu0 %v1165
    %1304 = vmatpush.bf16.msra.mxu0 %v1164
    %1305 = vmatmul.bf16.gmra.mxu0 %v885
    %v1306 = vpop.f32.mrf.mxu0
    %v1307 = vadd.f32 %v1294, %v1306
    %v1308 = vpop.f32.mrf.mxu0
    %1309 = vdwg.mxu0
    %1310 = vmatpush.bf16.msra.mxu0 %v1179
    %1311 = vmatpush.bf16.msra.mxu0 %v1178
    %1312 = vmatpush.bf16.msra.mxu0 %v1177
    %1313 = vmatpush.bf16.msra.mxu0 %v1176
    %1314 = vmatpush.bf16.msra.mxu0 %v1175
    %1315 = vmatpush.bf16.msra.mxu0 %v1174
    %1316 = vmatpush.bf16.msra.mxu0 %v1173
    %1317 = vmatpush.bf16.msra.mxu0 %v1172
    %1318 = vmatmul.bf16.gmra.mxu0 %v886
    %v1319 = vpop.f32.mrf.mxu0
    %v1320 = vadd.f32 %v1307, %v1319
    %v1321 = vpop.f32.mrf.mxu0
    %1322 = vdwg.mxu0
    %1323 = vmatpush.bf16.msra.mxu0 %v1187
    %1324 = vmatpush.bf16.msra.mxu0 %v1186
    %1325 = vmatpush.bf16.msra.mxu0 %v1185
    %1326 = vmatpush.bf16.msra.mxu0 %v1184
    %1327 = vmatpush.bf16.msra.mxu0 %v1183
    %1328 = vmatpush.bf16.msra.mxu0 %v1182
    %1329 = vmatpush.bf16.msra.mxu0 %v1181
    %1330 = vmatpush.bf16.msra.mxu0 %v1180
    %1331 = vmatmul.bf16.gmra.mxu0 %v887
    %v1332 = vpop.f32.mrf.mxu0
    %v1333 = vadd.f32 %v1320, %v1332
    %v1334 = vpop.f32.mrf.mxu0
    %1335 = vdwg.mxu0
    %1336 = vmatpush.bf16.msra.mxu0 %v1195
    %1337 = vmatpush.bf16.msra.mxu0 %v1194
    %1338 = vmatpush.bf16.msra.mxu0 %v1193
    %1339 = vmatpush.bf16.msra.mxu0 %v1192
    %1340 = vmatpush.bf16.msra.mxu0 %v1191
    %1341 = vmatpush.bf16.msra.mxu0 %v1190
    %1342 = vmatpush.bf16.msra.mxu0 %v1189
    %1343 = vmatpush.bf16.msra.mxu0 %v1188
    %1344 = vmatmul.bf16.gmra.mxu0 %v888
    %v1345 = vpop.f32.mrf.mxu0
    %v1346 = vadd.f32 %v1333, %v1345
    %v1347 = vpop.f32.mrf.mxu0
    %1348 = vdwg.mxu0
    %1349 = vmatpush.bf16.msra.mxu0 %v1203
    %1350 = vmatpush.bf16.msra.mxu0 %v1202
    %1351 = vmatpush.bf16.msra.mxu0 %v1201
    %1352 = vmatpush.bf16.msra.mxu0 %v1200
    %1353 = vmatpush.bf16.msra.mxu0 %v1199
    %1354 = vmatpush.bf16.msra.mxu0 %v1198
    %1355 = vmatpush.bf16.msra.mxu0 %v1197
    %1356 = vmatpush.bf16.msra.mxu0 %v1196
    %1357 = vmatmul.bf16.gmra.mxu0 %v889
    %v1358 = vpop.f32.mrf.mxu0
    %v1359 = vadd.f32 %v1346, %v1358
    %v1360 = vpop.f32.mrf.mxu0
    %1361 = vdwg.mxu0
    %1362 = vmatpush.bf16.msra.mxu0 %v1211
    %1363 = vmatpush.bf16.msra.mxu0 %v1210
    %1364 = vmatpush.bf16.msra.mxu0 %v1209
    %1365 = vmatpush.bf16.msra.mxu0 %v1208
    %1366 = vmatpush.bf16.msra.mxu0 %v1207
    %1367 = vmatpush.bf16.msra.mxu0 %v1206
    %1368 = vmatpush.bf16.msra.mxu0 %v1205
    %1369 = vmatpush.bf16.msra.mxu0 %v1204
    %1370 = vmatmul.bf16.gmra.mxu0 %v890
    %v1371 = vpop.f32.mrf.mxu0
    %v1372 = vadd.f32 %v1359, %v1371
    %v1373 = vpop.f32.mrf.mxu0
    %1374 = vdwg.mxu0
    %1375 = vmatpush.bf16.msra.mxu0 %v1219
    %1376 = vmatpush.bf16.msra.mxu0 %v1218
    %1377 = vmatpush.bf16.msra.mxu0 %v1217
    %1378 = vmatpush.bf16.msra.mxu0 %v1216
    %1379 = vmatpush.bf16.msra.mxu0 %v1215
    %1380 = vmatpush.bf16.msra.mxu0 %v1214
    %1381 = vmatpush.bf16.msra.mxu0 %v1213
    %1382 = vmatpush.bf16.msra.mxu0 %v1212
    %1383 = vmatmul.bf16.gmra.mxu0 %v891
    %v1384 = vpop.f32.mrf.mxu0
    %v1385 = vadd.f32 %v1372, %v1384
    %v1386 = vpop.f32.mrf.mxu0
    %1387 = vdwg.mxu0
    %v1388 = vmax.f32 %v1385, 0.0
    %v1389 = vld [vmem:[%s5] sm:$0x1]
    %v1390 = vperm.slane %v1389, 0
    %v1391 = vmul.f32 %v741, %v1390
    %v1392 = vld [vmem:[%s5 + $0x1] sm:$0x1]
    %v1393 = vperm.slane %v1392, 0
    %v1394 = vmul.f32 %v1388, %v1393
    %v1395 = vadd.f32 %v1391, %v1394
    %1396 = vadd.xlane.f32.xlu0 %v1395
    %v1397 = vpop.xlane.xlu0 %1396
    %v1398 = vld [vmem:[#allocation2] sm:$0x1]
    %v1400 = vperm.slane %v1398, 0
    %v1402 = vadd.f32 %v1397, %v1400
    %v1403 = vunpack.c.l.bf16 %v87
    %v1404 = vunpack.c.h.bf16 %v87
    %v1405 = vunpack.c.l.bf16 %v88
    %v1406 = vunpack.c.h.bf16 %v88
    %v1407 = vunpack.c.l.bf16 %v89
    %v1408 = vunpack.c.h.bf16 %v89
    %v1409 = vunpack.c.l.bf16 %v90
    %v1410 = vunpack.c.h.bf16 %v90
    %v1411 = vunpack.c.l.bf16 %v91
    %v1412 = vunpack.c.h.bf16 %v91
    %v1413 = vunpack.c.l.bf16 %v92
    %v1414 = vunpack.c.h.bf16 %v92
    %v1415 = vunpack.c.l.bf16 %v93
    %v1416 = vunpack.c.h.bf16 %v93
    %v1417 = vunpack.c.l.bf16 %v94
    %v1418 = vunpack.c.h.bf16 %v94
    %v1419 = vsub.f32 %v1403, %v1411
    %v1420 = vsub.f32 %v1404, %v1412
    %v1421 = vsub.f32 %v1405, %v1413
    %v1422 = vsub.f32 %v1406, %v1414
    %v1423 = vsub.f32 %v1407, %v1415
    %v1424 = vsub.f32 %v1408, %v1416
    %v1425 = vsub.f32 %v1409, %v1417
    %v1426 = vsub.f32 %v1410, %v1418
    %v1427 = vmul.f32 %v1419, %v1419
    %v1428 = vmul.f32 %v1420, %v1420
    %v1429 = vmul.f32 %v1421, %v1421
    %v1430 = vmul.f32 %v1422, %v1422
    %v1431 = vmul.f32 %v1423, %v1423
    %v1432 = vmul.f32 %v1424, %v1424
    %v1433 = vmul.f32 %v1425, %v1425
    %v1434 = vmul.f32 %v1426, %v1426
    %v1435 = vadd.f32 %v1427, %v1428
    %v1436 = vadd.f32 %v1435, %v1429
    %v1437 = vadd.f32 %v1436, %v1430
    %v1438 = vadd.f32 %v1437, %v1431
    %v1439 = vadd.f32 %v1438, %v1432
    %v1440 = vadd.f32 %v1439, %v1433
    %v1441 = vadd.f32 %v1440, %v1434
    %1442 = vadd.xlane.f32.xlu0 %v1441
    %v1443 = vpop.xlane.xlu0 %1442
    %v1444 = vmul.f32 %v1443, 0.0009765625
    %v1445 = vsub.f32 %v1402, %v1444
    %v1446 = vsub.f32 %v1445, 1.0
    %v1447 = vmul.f32 %v1446, 1.442695
    %v1448 = vpow.pop %v1447
    %vm1449 = vcmask 7168
    %1450 = vst.msk [vmem:[%s7] sm:$0xff] %vm1449, %v1448
    // Predicated region
    $region46: #{tpu_custom_call.1} parent=1 // pred_check
      _
    $region47: #{tpu_custom_call.1} parent=1 // pred_check_branch
      %1452 = sbr.rel (0) target = $region49
    $region48: #{tpu_custom_call.1} parent=1 // pred_region
      _
    $region49: #{tpu_custom_call.1} parent=1 // pred_fallthru
      _
    // Predicated region
    $region50: #{tpu_custom_call.1} parent=1 // pred_check
      _
    $region51: #{tpu_custom_call.1} parent=1 // pred_check_branch
      %1454 = sbr.rel (0) target = $region53
    $region52: #{tpu_custom_call.1} parent=1 // pred_region
      _
    $region53: #{tpu_custom_call.1} parent=1 // pred_fallthru
      _
    %1455 = vsyncpa [#allocation4], 1
    %1456 = vsyncpa [#allocation6], 1
    %1457 = vsyncpa [#allocation9], 1

</llo_original>
